<compile_context>
chip_gen: v7x
topology: tpu7x:2x2x1
jax: 0.10.0
libtpu: 0.0.40
codegen_flags: <defaults>
</compile_context>

<pallas_src>
import functools

import jax
import jax.numpy as jnp
from jax import lax
from jax.experimental import pallas as pl
from jax.experimental.pallas import tpu as pltpu

N_CORE_SPLIT = 2  # leading 'parallel' grid axis; ~2x on v7x, harmless on 1-TC chips


def _round_up(x, m):
    return ((x + m - 1) // m) * m


def _ce_ourloss_kernel(logits_ref, targets_ref, out_ref, acc_ref, *,
                       n_rows, tiles_per_core):
    core = pl.program_id(0)
    step = pl.program_id(1)

    @pl.when(step == 0)
    def _init():
        acc_ref[...] = jnp.zeros_like(acc_ref)

    x = logits_ref[...].astype(jnp.float32)        # (c_full, T), lane-dense, f32 upcast
    tgt = targets_ref[...]                         # (1, T) int32
    c_full, t = x.shape

    # Sample (lane) validity only — no full-tile mask (padding columns are zeros).
    col0 = (core * tiles_per_core + step) * t
    col = lax.broadcasted_iota(jnp.int32, (1, t), 1) + col0
    valid = col < n_rows                           # (1, T)

    # Numerically stable logsumexp over the class (sublane) axis.
    m = jnp.max(x, axis=0, keepdims=True)                              # (1, T)
    lse = jnp.log(jnp.sum(jnp.exp(x - m), axis=0, keepdims=True))      # (1, T)

    # Gather the target logit with a sublane-iota compare+select.  Targets are
    # strictly < num_class, so the dropped last column can never be selected
    # (the [:, :-1] slice of the reference is implicit).
    cls = lax.broadcasted_iota(jnp.int32, (c_full, t), 0)
    gathered = jnp.sum(jnp.where(cls == tgt, x, jnp.float32(0.0)),
                       axis=0, keepdims=True)                          # (1, T)

    # Per-sample NLL = m + lse - logits[target]; accumulate with a pure VPU add.
    nll = m + lse - gathered
    acc_ref[...] += jnp.where(valid, nll, jnp.float32(0.0))

    @pl.when(step == pl.num_programs(1) - 1)
    def _finalize():
        total = jnp.sum(acc_ref[...])              # single XLU reduce per core, at the end
        out_ref[...] = jnp.broadcast_to(total, out_ref.shape)


def ce_ourloss(logits, targets, num_class, *, tile_lane=32768):
    """logits: (N, num_class+1) float, targets: (N,) int in [0, num_class)."""
    n, c_full = logits.shape
    assert c_full == num_class + 1, "logits must have num_class + 1 columns"
    # TODO(synk): targets are assumed to lie in [0, num_class); a target == num_class
    # would silently select the dropped column (PyTorch's scatter_ would error).

    # Lane-pack: classes on sublanes, batch on lanes, padded so the grid divides evenly.
    # TODO(synk): ideally the producer emits logits already as (c_full, N) so this
    # transpose/pad (one extra XLA HBM pass) disappears entirely.
    tile = _round_up(min(int(tile_lane), _round_up(n, 128)), 128)
    n_pad = _round_up(n, N_CORE_SPLIT * tile)
    tiles_per_core = n_pad // (N_CORE_SPLIT * tile)

    logits_t = jnp.pad(jnp.transpose(logits), ((0, 0), (0, n_pad - n)))          # (c_full, n_pad)
    targets_l = jnp.pad(targets.astype(jnp.int32)[None, :], ((0, 0), (0, n_pad - n)))

    kernel = functools.partial(_ce_ourloss_kernel, n_rows=n,
                               tiles_per_core=tiles_per_core)

    cost = pl.CostEstimate(
        flops=10 * n * c_full,
        transcendentals=n * (c_full + 1),
        bytes_accessed=(logits.size * logits.dtype.itemsize) + n * 4
                       + N_CORE_SPLIT * 8 * 128 * 4,
    )

    partials = pl.pallas_call(
        kernel,
        out_shape=jax.ShapeDtypeStruct((N_CORE_SPLIT * 8, 128), jnp.float32),
        grid_spec=pltpu.PrefetchScalarGridSpec(
            num_scalar_prefetch=0,
            grid=(N_CORE_SPLIT, tiles_per_core),
            in_specs=[
                pl.BlockSpec((c_full, tile), lambda c, i: (0, c * tiles_per_core + i)),
                pl.BlockSpec((1, tile), lambda c, i: (0, c * tiles_per_core + i)),
            ],
            out_specs=pl.BlockSpec((8, 128), lambda c, i: (c, 0)),
            scratch_shapes=[pltpu.VMEM((1, tile), jnp.float32)],
        ),
        compiler_params=pltpu.CompilerParams(
            dimension_semantics=("parallel", "arbitrary"),
            vmem_limit_bytes=32 * 1024 * 1024,
        ),
        cost_estimate=cost,
    )(logits_t, targets_l)

    # Each core's (8,128) block is a broadcast of its partial sum; combine + mean.
    return jnp.sum(partials[0::8, 0]) / jnp.float32(n)


def ce_ourloss_ref(logits, targets, num_class):
    """Pure-JAX reference mirroring the PyTorch forward."""
    target_oh = jax.nn.one_hot(targets, num_class, dtype=jnp.float32)       # (N, c)
    logsm = jax.nn.log_softmax(logits.astype(jnp.float32), axis=1)[:, :-1]  # (N, c)
    return -jnp.mean(jnp.sum(logsm * target_oh, axis=1))


if __name__ == "__main__":
    num_class = 11          # as in the module docstring ("class_num=11")
    c_full = num_class + 1  # logits carry one extra (dropped) column

    key = jax.random.PRNGKey(0)

    # Test 1: tiny single-tile case (grid (2,1); second core sees only padding).
    batch = 8
    k1, k2, key = jax.random.split(key, 3)
    logits = jax.random.normal(k1, (batch, c_full), dtype=jnp.float32)
    targets = jax.random.randint(k2, (batch,), 0, num_class, dtype=jnp.int32)
    loss = jax.block_until_ready(ce_ourloss(logits, targets, num_class))
    ref = ce_ourloss_ref(logits, targets, num_class)
    assert jnp.allclose(loss, ref, atol=1e-5, rtol=1e-5), (loss, ref)

    # Test 2: multiple tiles per core + ragged tail (exercises the running VMEM
    # accumulator, the lane-validity mask, and the 2-way core split, via a small tile).
    batch2 = 300
    k3, k4, _ = jax.random.split(key, 3)
    logits2 = jax.random.normal(k3, (batch2, c_full), dtype=jnp.float32)
    targets2 = jax.random.randint(k4, (batch2,), 0, num_class, dtype=jnp.int32)
    loss2 = jax.block_until_ready(ce_ourloss(logits2, targets2, num_class, tile_lane=128))
    ref2 = ce_ourloss_ref(logits2, targets2, num_class)
    assert jnp.allclose(loss2, ref2, atol=1e-5, rtol=1e-5), (loss2, ref2)

    print("KERNEL_OK")
</pallas_src>

<mosaic_0001>
module attributes {stable_mosaic.version = 11 : i64} {
  func.func @_ce_ourloss_kernel(%arg0: i32, %arg1: i32, %arg2: memref<12x128xf32, #tpu.memory_space<vmem>>, %arg3: memref<1x128xi32, #tpu.memory_space<vmem>>, %arg4: memref<8x128xf32, #tpu.memory_space<vmem>>, %arg5: memref<1x128xf32, #tpu.memory_space<vmem>>) attributes {dimension_semantics = [#tpu.dimension_semantics<parallel>, #tpu.dimension_semantics<arbitrary>], iteration_bounds = array<i64: 2, 1>, scalar_prefetch = 0 : i64, scratch_operands = 1 : i64, tpu.core_type = #tpu.core_type<tc>, window_params = [{transform_indices = @transform_0, window_bounds = array<i64: 12, 128>}, {transform_indices = @transform_1, window_bounds = array<i64: 1, 128>}, {transform_indices = @transform_2, window_bounds = array<i64: 8, 128>}]} {
    %c0_i32 = arith.constant 0 : i32
    %0 = arith.cmpi eq, %arg1, %c0_i32 : i32
    %1 = arith.extui %0 : i1 to i32
    %c0_i32_0 = arith.constant 0 : i32
    %2 = arith.cmpi ne, %1, %c0_i32_0 : i32
    scf.if %2 {
      %cst_14 = arith.constant 0.000000e+00 : f32
      %38 = vector.broadcast %cst_14 : f32 to vector<1x128xf32>
      %c0_15 = arith.constant 0 : index
      %c0_16 = arith.constant 0 : index
      %39 = vector.load %arg5[%c0_15, %c0_16] : memref<1x128xf32, #tpu.memory_space<vmem>>, vector<1x128xf32>
      tpu.vector_store %arg5[%c0_15, %c0_16], %38 {strides = array<i32>} : memref<1x128xf32, #tpu.memory_space<vmem>>, vector<1x128xf32>,
    } else {
    }
    %c0 = arith.constant 0 : index
    %c0_1 = arith.constant 0 : index
    %3 = vector.load %arg2[%c0, %c0_1] : memref<12x128xf32, #tpu.memory_space<vmem>>, vector<12x128xf32>
    %c0_2 = arith.constant 0 : index
    %c0_3 = arith.constant 0 : index
    %4 = vector.load %arg3[%c0_2, %c0_3] : memref<1x128xi32, #tpu.memory_space<vmem>>, vector<1x128xi32>
    %c1_i32 = arith.constant 1 : i32
    %5 = arith.muli %arg0, %c1_i32 : i32
    %6 = arith.addi %5, %arg1 : i32
    %c128_i32 = arith.constant 128 : i32
    %7 = arith.muli %6, %c128_i32 : i32
    %8 = tpu.iota {dimensions = array<i32: 1>} : vector<1x128xi32>
    %9 = vector.broadcast %7 : i32 to vector<1x128xi32>
    %10 = arith.addi %8, %9 : vector<1x128xi32>
    %c8_i32 = arith.constant 8 : i32
    %11 = vector.broadcast %c8_i32 : i32 to vector<1x128xi32>
    %12 = arith.cmpi slt, %10, %11 : vector<1x128xi32>
    %cst = arith.constant dense<0xFF800000> : vector<128xf32>
    %13 = vector.multi_reduction <maximumf>, %3, %cst [0] : vector<12x128xf32> to vector<128xf32>
    %14 = vector.shape_cast %13 : vector<128xf32> to vector<1x128xf32>
    %15 = vector.broadcast %14 : vector<1x128xf32> to vector<12x128xf32>
    %16 = arith.subf %3, %15 : vector<12x128xf32>
    %17 = math.exp %16 : vector<12x128xf32>
    %cst_4 = arith.constant dense<0.000000e+00> : vector<128xf32>
    %18 = vector.multi_reduction <add>, %17, %cst_4 [0] : vector<12x128xf32> to vector<128xf32>
    %19 = vector.shape_cast %18 : vector<128xf32> to vector<1x128xf32>
    %20 = math.log %19 : vector<1x128xf32>
    %21 = tpu.iota {dimensions = array<i32: 0>} : vector<12x128xi32>
    %22 = vector.broadcast %4 : vector<1x128xi32> to vector<12x128xi32>
    %23 = arith.cmpi eq, %21, %22 : vector<12x128xi32>
    %cst_5 = arith.constant 0.000000e+00 : f32
    %24 = vector.broadcast %cst_5 : f32 to vector<12x128xf32>
    %25 = arith.select %23, %3, %24 : vector<12x128xi1>, vector<12x128xf32>
    %cst_6 = arith.constant dense<0.000000e+00> : vector<128xf32>
    %26 = vector.multi_reduction <add>, %25, %cst_6 [0] : vector<12x128xf32> to vector<128xf32>
    %27 = vector.shape_cast %26 : vector<128xf32> to vector<1x128xf32>
    %28 = arith.addf %14, %20 : vector<1x128xf32>
    %29 = arith.subf %28, %27 : vector<1x128xf32>
    %c0_7 = arith.constant 0 : index
    %c0_8 = arith.constant 0 : index
    %30 = vector.load %arg5[%c0_7, %c0_8] : memref<1x128xf32, #tpu.memory_space<vmem>>, vector<1x128xf32>
    %cst_9 = arith.constant 0.000000e+00 : f32
    %31 = vector.broadcast %cst_9 : f32 to vector<1x128xf32>
    %32 = arith.select %12, %29, %31 : vector<1x128xi1>, vector<1x128xf32>
    %33 = arith.addf %30, %32 : vector<1x128xf32>
    %c0_10 = arith.constant 0 : index
    %c0_11 = arith.constant 0 : index
    %34 = vector.load %arg5[%c0_10, %c0_11] : memref<1x128xf32, #tpu.memory_space<vmem>>, vector<1x128xf32>
    tpu.vector_store %arg5[%c0_10, %c0_11], %33 {strides = array<i32>} : memref<1x128xf32, #tpu.memory_space<vmem>>, vector<1x128xf32>,
    %c0_i32_12 = arith.constant 0 : i32
    %35 = arith.cmpi eq, %arg1, %c0_i32_12 : i32
    %36 = arith.extui %35 : i1 to i32
    %c0_i32_13 = arith.constant 0 : i32
    %37 = arith.cmpi ne, %36, %c0_i32_13 : i32
    scf.if %37 {
      %c0_14 = arith.constant 0 : index
      %c0_15 = arith.constant 0 : index
      %38 = vector.load %arg5[%c0_14, %c0_15] : memref<1x128xf32, #tpu.memory_space<vmem>>, vector<1x128xf32>
      %39 = vector.shape_cast %38 : vector<1x128xf32> to vector<1x1x128xf32>
      %cst_16 = arith.constant dense<0.000000e+00> : vector<1xf32>
      %40 = vector.multi_reduction <add>, %39, %cst_16 [1, 2] : vector<1x1x128xf32> to vector<1xf32>
      %41 = vector.shape_cast %40 : vector<1xf32> to vector<1x1x1xf32>
      %42 = vector.extract %41[0, 0, 0] : f32 from vector<1x1x1xf32>
      %43 = vector.broadcast %42 : f32 to vector<8x128xf32>
      %c0_17 = arith.constant 0 : index
      %c0_18 = arith.constant 0 : index
      %44 = vector.load %arg4[%c0_17, %c0_18] : memref<8x128xf32, #tpu.memory_space<vmem>>, vector<8x128xf32>
      tpu.vector_store %arg4[%c0_17, %c0_18], %43 {strides = array<i32>} : memref<8x128xf32, #tpu.memory_space<vmem>>, vector<8x128xf32>,
    } else {
    }
    return
  }
  func.func @transform_0(%arg0: i32, %arg1: i32) -> (i32, i32) {
    %c1_i32 = arith.constant 1 : i32
    %0 = arith.muli %arg0, %c1_i32 : i32
    %1 = arith.addi %0, %arg1 : i32
    %c0_i32 = arith.constant 0 : i32
    %c0_i32_0 = arith.constant 0 : i32
    return %c0_i32, %1 : i32, i32
  }
  func.func @transform_1(%arg0: i32, %arg1: i32) -> (i32, i32) {
    %c1_i32 = arith.constant 1 : i32
    %0 = arith.muli %arg0, %c1_i32 : i32
    %1 = arith.addi %0, %arg1 : i32
    %c0_i32 = arith.constant 0 : i32
    %c0_i32_0 = arith.constant 0 : i32
    return %c0_i32, %1 : i32, i32
  }
  func.func @transform_2(%arg0: i32, %arg1: i32) -> (i32, i32) {
    %c0_i32 = arith.constant 0 : i32
    %c0_i32_0 = arith.constant 0 : i32
    return %arg0, %c0_i32 : i32, i32
  }
}

</mosaic_0001>

<llo_original>
// kernel: tpu_custom_call.1
$region0: #{tpu_custom_call.1}
  #allocation0 [shape = 'u32[]', space=smem, size = 0x4, offset = 0x4, fixed_abs, tag = 'smem constant byte address 0x4 - core index']
  #allocation1 [shape = 'u32[144,128]{1,0:T(1,128)}', space=vmem, size = 0x12000, scoped, tag = 'internal scratch']
  #allocation2 [shape = 'f32[1,128]{1,0:T(1,128)}', space=vmem, size = 0x200, scoped, tag = 'scratch operand']
  %s0 = inlined_call_operand.hbm [shape: f32[12,256], index: 0, kind: input, shape index: {}]
  %s1 = inlined_call_operand.vmem [shape: s32[1,256], index: 1, kind: input, shape index: {}]
  %s2 = inlined_call_operand.hbm [shape: f32[16,128], index: 2, kind: output, shape index: {}]
  %s3 = sld [smem:[#allocation0]]
  $region53: #{tpu_custom_call.1} parent=0
    _
  %s5 = ssub.s32 1, %s3
  %s6 = scalar_select 0, %s5, %s3
  $region1: #{tpu_custom_call.1} parent=0
    #allocation3 [shape = 'u8[16384]{0}', space=vmem, size = 0x4000, scoped, tag = 'input window, operand 0']
    #allocation4 [shape = 's32[2]{0}', space=sflag, size = 0x8, scoped, tag = 'scoped memory for tpu_custom_call.1']
    #allocation5 [shape = 's32[2]{0}', space=sflag, size = 0x8, scoped, tag = 'scoped memory for tpu_custom_call.1']
    #allocation6 [shape = 'u8[8192]{0}', space=vmem, size = 0x2000, scoped, tag = 'output window, operand 0']
    %7 = vsyncpa [#allocation4], 0
    %s8 = scalar_lea.sflag [#allocation4], 1
    %9 = vsyncpa %s8, 0
    %10 = vsyncpa [#allocation5], 0
    %s11 = scalar_lea.sflag [#allocation5], 1
    %12 = vsyncpa %s11, 0
    loop: start=0, step=1, limit=4
    $region2: #{tpu_custom_call.1} parent=1 // loop_pre_header
      _
    $region3: #{tpu_custom_call.1} parent=1 // loop_header
      %s14 = sphi 0, %s18
      %p15 = scmp.ge.s32.totalorder %s14, 4
      %s21 = sphi 0, %s33
      %s22 = sphi 0, %s29
      %s23 = sphi 0, %s21
      %s24 = sphi 0, %s22
      %s25 = sphi 0, %s23
      %s26 = sphi 0, %s24
      %s38 = sphi 0, %s40
      %s41 = sphi 0, %s38
      %s42 = sphi 0, %s41
      %s58 = sphi 0, %s42
      %s66 = sphi 0, %s68
      %s69 = sphi 0, %s66
      %s70 = sphi 0, %s69
      %s86 = sphi 0, %s70
      %s92 = sphi 0, %s94
      %s95 = sphi 0, %s92
      %s96 = sphi 0, %s95
      %s112 = sphi 0, %s96
    $region4: #{tpu_custom_call.1} parent=1 // loop_header_branch
      %17 = sbr.rel (%p15) target = $region8
    $region5: #{tpu_custom_call.1} parent=1 // loop_body
      %s19 = ssub.s32 %s14, 1
      %s20 = ssub.s32 %s14, 2
      %s27 = sadd.s32 1, %s22
      %p28 = scmp.ge.s32.totalorder %s27, 1
      %s29 = scalar_select %p28, 0, %s27
      %s30 = sadd.s32 1, %s21
      %s31 = scalar_select %p28, %s30, %s21
      %p32 = scmp.ge.s32.totalorder %s31, 2
      %s33 = scalar_select %p32, 0, %s31
      %s34 = sadd.s32 %s21, %s22
      %s35 = sadd.s32 %s33, %s29
      %s36 = ssub.s32 %s34, %s35
      %p37 = scmp.eq.s32.totalorder %s36, 0
      %s39 = sadd.s32 %s38, 1
      %s40 = scalar_select %p37, %s38, %s39
      %p43 = pneg %p37
      %p44 = scmp.eq.s32.totalorder %s14, 1
      %p45 = por %p43, %p44
      %p46 = scmp.ne.s32.totalorder %s38, %s41
      %p47 = scmp.eq.s32.totalorder %s14, 0
      %p48 = por %p46, %p47
      %p49 = scmp.ne.s32.totalorder %s38, %s41
      %p50 = scmp.eq.s32.totalorder %s19, 1
      %p51 = por %p49, %p50
      %p52 = scmp.ne.s32.totalorder %s41, %s42
      %p53 = scmp.eq.s32.totalorder %s19, 0
      %p54 = por %p52, %p53
      %p55 = scmp.ne.s32.totalorder %s41, %s42
      %p56 = scmp.eq.s32.totalorder %s20, 1
      %p57 = por %p55, %p56
      %p59 = scmp.ne.s32.totalorder %s42, %s58
      %p60 = scmp.eq.s32.totalorder %s20, 0
      %p61 = por %p59, %p60
      %s62 = sadd.s32 %s21, %s22
      %s63 = sadd.s32 %s33, %s29
      %s64 = ssub.s32 %s62, %s63
      %p65 = scmp.eq.s32.totalorder %s64, 0
      %s67 = sadd.s32 %s66, 1
      %s68 = scalar_select %p65, %s66, %s67
      %p71 = pneg %p65
      %p72 = scmp.eq.s32.totalorder %s14, 1
      %p73 = por %p71, %p72
      %p74 = scmp.ne.s32.totalorder %s66, %s69
      %p75 = scmp.eq.s32.totalorder %s14, 0
      %p76 = por %p74, %p75
      %p77 = scmp.ne.s32.totalorder %s66, %s69
      %p78 = scmp.eq.s32.totalorder %s19, 1
      %p79 = por %p77, %p78
      %p80 = scmp.ne.s32.totalorder %s69, %s70
      %p81 = scmp.eq.s32.totalorder %s19, 0
      %p82 = por %p80, %p81
      %p83 = scmp.ne.s32.totalorder %s69, %s70
      %p84 = scmp.eq.s32.totalorder %s20, 1
      %p85 = por %p83, %p84
      %p87 = scmp.ne.s32.totalorder %s70, %s86
      %p88 = scmp.eq.s32.totalorder %s20, 0
      %p89 = por %p87, %p88
      %s90 = ssub.s32 %s21, %s33
      %p91 = scmp.eq.s32.totalorder %s90, 0
      %s93 = sadd.s32 %s92, 1
      %s94 = scalar_select %p91, %s92, %s93
      %p97 = pneg %p91
      %p98 = scmp.eq.s32.totalorder %s14, 1
      %p99 = por %p97, %p98
      %p100 = scmp.ne.s32.totalorder %s92, %s95
      %p101 = scmp.eq.s32.totalorder %s14, 0
      %p102 = por %p100, %p101
      %p103 = scmp.ne.s32.totalorder %s92, %s95
      %p104 = scmp.eq.s32.totalorder %s19, 1
      %p105 = por %p103, %p104
      %p106 = scmp.ne.s32.totalorder %s95, %s96
      %p107 = scmp.eq.s32.totalorder %s19, 0
      %p108 = por %p106, %p107
      %p109 = scmp.ne.s32.totalorder %s95, %s96
      %p110 = scmp.eq.s32.totalorder %s20, 1
      %p111 = por %p109, %p110
      %p113 = scmp.ne.s32.totalorder %s96, %s112
      %p114 = scmp.eq.s32.totalorder %s20, 0
      %p115 = por %p113, %p114
      %p116 = scmp.le.s32.totalorder 1, %s14
      %p117 = scmp.lt.s32.totalorder %s14, 3
      %p118 = pnand %p116, %p117
      %p119 = pneg %p118
      // Predicated region
      $region9: #{tpu_custom_call.1} parent=5 // pred_check
        _
      $region10: #{tpu_custom_call.1} parent=5 // pred_check_branch
        %121 = sbr.rel (%p118) target = $region12
      $region11: #{tpu_custom_call.1} parent=5 // pred_region
        %s122 = ssub.s32 %s14, 1
      $region12: #{tpu_custom_call.1} parent=5 // pred_fallthru
        _
      %p123 = scmp.lt.s32.totalorder %s14, 2
      // Predicated region
      $region13: #{tpu_custom_call.1} parent=5 // pred_check
        %p124 = pneg %p123
      $region14: #{tpu_custom_call.1} parent=5 // pred_check_branch
        %126 = sbr.rel (%p124) target = $region16
      $region15: #{tpu_custom_call.1} parent=5 // pred_region
        // Predicated region
        $region17: #{tpu_custom_call.1} parent=15 // pred_check
          %p127 = pneg %p48
        $region18: #{tpu_custom_call.1} parent=15 // pred_check_branch
          %129 = sbr.rel (%p127) target = $region20
        $region19: #{tpu_custom_call.1} parent=15 // pred_region
          %s130 = sand.u32 %s38, 1
          %s131 = scalar_lea.sflag [#allocation4], %s130
          %s132 = sand.u32 %s38, 1
          %s133 = smul.addr %s132, 16
          %s134 = scalar_lea.vmem [#allocation3], %s133
          %s135 = sadd.s32 %s21, %s22
          %s137 = ssub.s32 256, 256
          %138 = vsyncadd %s131, %s137
          %s139 = smul.addr %s135, 128
          %s140 = scalar_lea.hbm %s0, %s139
          %s141 = sshll.u32 %s134, 4
          %s142 = int_to_ptr.vmem [resolvable:$true] %s141
          %147 = dma.hbm_to_vmem [thread:$0]  %s140, 256, %s142, %s131, 256, 128, 8
        $region20: #{tpu_custom_call.1} parent=15 // pred_fallthru
          _
        // Predicated region
        $region21: #{tpu_custom_call.1} parent=15 // pred_check
          %p148 = pneg %p76
        $region22: #{tpu_custom_call.1} parent=15 // pred_check_branch
          %150 = sbr.rel (%p148) target = $region24
        $region23: #{tpu_custom_call.1} parent=15 // pred_region
          %s151 = sadd.s32 %s21, %s22
          %p152 = scmp.lt.s32.totalorder %s151, 1
          %s153 = scalar_select %p152, %s151, 1
          %s154 = scalar_lea.vmem %s1, %s153
          %s155 = sadd.s32 %s21, %s22
        $region24: #{tpu_custom_call.1} parent=15 // pred_fallthru
          _
      $region16: #{tpu_custom_call.1} parent=5 // pred_fallthru
        _
      %p156 = scmp.le.s32.totalorder 1, %s14
      %p157 = scmp.lt.s32.totalorder %s14, 3
      %p158 = pnand %p156, %p157
      %p159 = pneg %p158
      // Predicated region
      $region25: #{tpu_custom_call.1} parent=5 // pred_check
        _
      $region26: #{tpu_custom_call.1} parent=5 // pred_check_branch
        %161 = sbr.rel (%p158) target = $region28
      $region27: #{tpu_custom_call.1} parent=5 // pred_region
        %s162 = ssub.s32 %s14, 1
        %s163 = sand.u32 %s41, 1
        %s164 = scalar_lea.sflag [#allocation4], %s163
        %s165 = sand.u32 %s41, 1
        %s166 = smul.addr %s165, 16
        %s167 = scalar_lea.vmem [#allocation3], %s166
        // Predicated region
        $region29: #{tpu_custom_call.1} parent=27 // pred_check
          %p168 = pneg %p54
        $region30: #{tpu_custom_call.1} parent=27 // pred_check_branch
          %170 = sbr.rel (%p168) target = $region32
        $region31: #{tpu_custom_call.1} parent=27 // pred_region
          %171 = dma.done %s164, 256
        $region32: #{tpu_custom_call.1} parent=27 // pred_fallthru
          _
        %s172 = sand.u32 %s41, 1
        %s173 = scalar_lea.sflag [#allocation4], %s172
        %s174 = sand.u32 %s41, 1
        %s175 = smul.addr %s174, 16
        %s176 = scalar_lea.vmem [#allocation3], %s175
        %p177 = pneg %p54
        %p178 = pneg %p51
        %s179 = sadd.s32 %s23, %s24
        %p180 = scmp.lt.s32.totalorder %s179, 1
        %s181 = scalar_select %p180, %s179, 1
        %s182 = scalar_lea.vmem %s1, %s181
        %p183 = pneg %p82
        %p184 = pneg %p79
        %p185 = pneg %p108
        %p186 = pneg %p105
        %s187 = sand.u32 %s95, 1
        %s188 = scalar_lea.sflag [#allocation5], %s187
        %s189 = sand.u32 %s95, 1
        %s190 = smul.addr %s189, 8
        %s191 = scalar_lea.vmem [#allocation6], %s190
        %s192 = sadd.s32 %s23, %s24
        %s193 = sadd.s32 %s23, %s24
        %p194 = scmp.lt.s32.totalorder %s193, 1
        %s195 = scalar_select %p194, %s193, 1
        %s196 = scalar_lea.vmem %s1, %s195
        %s197 = sadd.s32 %s23, %s24
        %p198 = scmp.eq.s32.totalorder %s24, 0
        // Predicated region
        $region33: #{tpu_custom_call.1} parent=27 // pred_check
          %p199 = pneg %p198
        $region34: #{tpu_custom_call.1} parent=27 // pred_check_branch
          %201 = sbr.rel (%p199) target = $region36
        $region35: #{tpu_custom_call.1} parent=27 // pred_region
          %202 = vst [vmem:[#allocation2] sm:$0x1] 0.0
        $region36: #{tpu_custom_call.1} parent=27 // pred_fallthru
          _
        %v203 = vld [vmem:[%s167] sm:$0xff]
        %v204 = vld [vmem:[%s167 + $0x8] sm:$0xf]
        %v205 = vld [vmem:[%s196] sm:$0x1]
        %s206 = sadd.s32 %s23, %s24
        %s207 = smul.u32 %s206, 128
        %v208 = vlaneseq
        %v209 = vand.u32 %v208, 127
        %v210 = vstv %s207
        %v211 = vadd.s32 %v209, %v210
        %vm212 = vcmp.lt.s32.totalorder %v211, 8
        %vm213 = vcmask 1043456
        %v214 = vsel %vm213, %v204, -inf
        %v215 = vmax.f32 %v203, %v214
        %v216 = vrot.slane %v215, 4
        %v217 = vmax.f32 %v215, %v216
        %v218 = vrot.slane %v217, 2
        %v219 = vmax.f32 %v217, %v218
        %v220 = vrot.slane %v219, 1
        %v221 = vmax.f32 %v219, %v220
        %v222 = vsub.f32 %v203, %v221
        %v223 = vsub.f32 %v204, %v221
        %v224 = vmul.f32 %v222, 1.442695
        %v225 = vpow.pop %v224
        %v226 = vmul.f32 %v223, 1.442695
        %v227 = vpow.pop %v226
        %v228 = vsel %vm213, %v227, 0.0
        %v229 = vadd.f32 %v225, %v228
        %v230 = vrot.slane %v229, 4
        %v231 = vadd.f32 %v229, %v230
        %v232 = vrot.slane %v231, 2
        %v233 = vadd.f32 %v231, %v232
        %v234 = vrot.slane %v233, 1
        %v235 = vadd.f32 %v233, %v234
        %v236 = vlog2.pop %v235
        %v237 = vmul.f32 %v236, 0.6931472
        %v238 = vlaneseq
        %v239 = vshrl.u32 %v238, 7
        %v240 = vadd.s32 %v239, 8
        %v241 = vlaneseq
        %v242 = vshrl.u32 %v241, 7
        %v243 = vsub.s32 0, %v242
        %v244 = vrot.slane %v205, %v243
        %vm245 = vcmp.eq.s32.totalorder %v239, %v244
        %vm246 = vcmp.eq.s32.totalorder %v240, %v244
        %v247 = vsel %vm245, %v203, 0.0
        %v248 = vsel %vm246, %v204, 0.0
        %v249 = vsel %vm213, %v248, 0.0
        %v250 = vadd.f32 %v247, %v249
        %v251 = vrot.slane %v250, 4
        %v252 = vadd.f32 %v250, %v251
        %v253 = vrot.slane %v252, 2
        %v254 = vadd.f32 %v252, %v253
        %v255 = vrot.slane %v254, 1
        %v256 = vadd.f32 %v254, %v255
        %v257 = vadd.f32 %v221, %v237
        %v258 = vsub.f32 %v257, %v256
        %v259 = vld [vmem:[#allocation2] sm:$0x1]
        %v260 = vsel %vm212, %v258, 0.0
        %v261 = vadd.f32 %v259, %v260
        %262 = vst [vmem:[#allocation2] sm:$0x1] %v261
        // Predicated region
        $region37: #{tpu_custom_call.1} parent=27 // pred_check
          %p263 = pneg %p198
        $region38: #{tpu_custom_call.1} parent=27 // pred_check_branch
          %265 = sbr.rel (%p263) target = $region40
        $region39: #{tpu_custom_call.1} parent=27 // pred_region
          %v266 = vld [vmem:[#allocation2] sm:$0x1]
          %vm267 = vcmask 1040384
          %v268 = vsel %vm267, %v266, 0.0
          %269 = vadd.xlane.f32.xlu0 %v268
          %v270 = vpop.xlane.xlu0 %269
          %v271 = vrot.slane %v270, 4
          %v272 = vadd.f32 %v270, %v271
          %v273 = vrot.slane %v272, 2
          %v274 = vadd.f32 %v272, %v273
          %v275 = vrot.slane %v274, 1
          %v276 = vadd.f32 %v274, %v275
          %s277 = vtos %v276
          %v278 = vstv %s277
          %279 = vst [vmem:[%s191] sm:$0xff] %v278
        $region40: #{tpu_custom_call.1} parent=27 // pred_fallthru
          _
        %s280 = sand.u32 %s95, 1
        %s281 = scalar_lea.sflag [#allocation5], %s280
        %s282 = sand.u32 %s95, 1
        %s283 = smul.addr %s282, 8
        %s284 = scalar_lea.vmem [#allocation6], %s283
        // Predicated region
        $region41: #{tpu_custom_call.1} parent=27 // pred_check
          %p285 = pneg %p105
        $region42: #{tpu_custom_call.1} parent=27 // pred_check_branch
          %287 = sbr.rel (%p285) target = $region44
        $region43: #{tpu_custom_call.1} parent=27 // pred_region
          %s289 = ssub.s32 128, 128
          %290 = vsyncadd %s281, %s289
          %s291 = smul.addr %s23, 128
          %s292 = scalar_lea.hbm %s2, %s291
          %s294 = sshll.u32 %s284, 4
          %s295 = int_to_ptr.vmem [resolvable:$true] %s294
          %297 = dma.vmem_to_hbm [thread:$0]  %s295, 128, %s292, %s281
        $region44: #{tpu_custom_call.1} parent=27 // pred_fallthru
          _
      $region28: #{tpu_custom_call.1} parent=5 // pred_fallthru
        _
      %p298 = scmp.le.s32.totalorder 2, %s14
      // Predicated region
      $region45: #{tpu_custom_call.1} parent=5 // pred_check
        %p299 = pneg %p298
      $region46: #{tpu_custom_call.1} parent=5 // pred_check_branch
        %301 = sbr.rel (%p299) target = $region48
      $region47: #{tpu_custom_call.1} parent=5 // pred_region
        %s302 = ssub.s32 %s14, 2
        // Predicated region
        $region49: #{tpu_custom_call.1} parent=47 // pred_check
          %p303 = pneg %p111
        $region50: #{tpu_custom_call.1} parent=47 // pred_check_branch
          %305 = sbr.rel (%p303) target = $region52
        $region51: #{tpu_custom_call.1} parent=47 // pred_region
          %s306 = sand.u32 %s96, 1
          %s307 = scalar_lea.sflag [#allocation5], %s306
          %s308 = sand.u32 %s96, 1
          %s309 = smul.addr %s308, 8
          %s310 = scalar_lea.vmem [#allocation6], %s309
          %311 = dma.done %s307, 128
        $region52: #{tpu_custom_call.1} parent=47 // pred_fallthru
          _
      $region48: #{tpu_custom_call.1} parent=5 // pred_fallthru
        _
    $region6: #{tpu_custom_call.1} parent=1 // loop_footer
      %s18 = sadd.s32 1, %s14
    $region7: #{tpu_custom_call.1} parent=1 // loop_footer_branch
      %13 = sbr.rel target = $region3
    $region8: #{tpu_custom_call.1} parent=1 // loop_exit
      _
    %312 = vsyncpa [#allocation4], 1
    %s313 = scalar_lea.sflag [#allocation4], 1
    %314 = vsyncpa %s313, 1
    %315 = vsyncpa [#allocation5], 1
    %s316 = scalar_lea.sflag [#allocation5], 1
    %317 = vsyncpa %s316, 1

</llo_original>
